<compile_context>
chip_gen: v6e
topology: v6e:2x2x1
jax: 0.10.0
libtpu: 0.0.40
codegen_flags: <defaults>
</compile_context>

<pallas_src>
import math

import jax
import jax.numpy as jnp
from jax import lax
from jax.experimental import pallas as pl
from jax.experimental.pallas import tpu as pltpu


# Scoped VMEM cap: above v6e's 32 MiB default, comfortably under v7x's 64 MiB physical.
_VMEM_LIMIT = 48 * 1024 * 1024


def _pick_block(length: int, cap: int) -> int:
    """Largest block <= cap dividing `length`; full axis if it already fits.

    Partial blocks are kept multiples of 128 so the (16, 128) bf16 tiling stays legal
    and energy/output stores stay lane-dense.
    """
    if length <= cap:
        return length
    for cand in range(cap, 0, -128):
        if cand % 128 == 0 and length % cand == 0:
            return cand
    return length  # fall back: whole axis in one block (always legal)


def _pick_row_block(rows: int, cap: int = 1024) -> int:
    """Row block for the row-blocked matmul kernel (multiple of 16 for bf16)."""
    if rows <= cap:
        return rows
    for cand in range(cap, 0, -16):
        if rows % cand == 0:
            return cand
    return rows


# ---------------------------------------------------------------------------
# Kernel 1: row-blocked matmul (+ bias).  Used for the shared per-head Q/K/V
# projections and for the single full-depth fc_out contraction.
# ---------------------------------------------------------------------------
def _rows_matmul_kernel(x_ref, wT_ref, b_ref, o_ref):
    # o = x @ W^T + b for one block of rows: bf16 MXU inputs, f32 accumulation.
    acc = jnp.dot(x_ref[...], wT_ref[...], preferred_element_type=jnp.float32)
    o_ref[...] = (acc + b_ref[...]).astype(o_ref.dtype)


def _rows_matmul(x, wT, b, *, out_dtype, block_rows=1024):
    """(rows, Cin) @ (Cin, Cout) + (1, Cout), tiled over rows."""
    rows, cin = x.shape
    cout = wT.shape[1]
    br = _pick_row_block(rows, block_rows)
    assert rows % br == 0

    cost = pl.CostEstimate(
        flops=2 * rows * cin * cout,
        transcendentals=0,
        bytes_accessed=int(x.size * x.dtype.itemsize
                           + wT.size * wT.dtype.itemsize
                           + b.size * b.dtype.itemsize
                           + rows * cout * jnp.dtype(out_dtype).itemsize),
    )

    return pl.pallas_call(
        _rows_matmul_kernel,
        out_shape=jax.ShapeDtypeStruct((rows, cout), out_dtype),
        grid_spec=pltpu.PrefetchScalarGridSpec(
            num_scalar_prefetch=0,
            grid=(rows // br,),
            in_specs=[
                pl.BlockSpec((br, cin), lambda r: (r, 0)),
                # grid-invariant weights/bias: single buffer, no pointless 2x VMEM
                pl.BlockSpec((cin, cout), lambda r: (0, 0),
                             pipeline_mode=pl.Buffered(1)),
                pl.BlockSpec((1, cout), lambda r: (0, 0),
                             pipeline_mode=pl.Buffered(1)),
            ],
            out_specs=pl.BlockSpec((br, cout), lambda r: (r, 0)),
        ),
        compiler_params=pltpu.CompilerParams(
            dimension_semantics=("parallel",),
            vmem_limit_bytes=_VMEM_LIMIT,
        ),
        cost_estimate=cost,
    )(x, wT, b)


# ---------------------------------------------------------------------------
# Kernel 2: flash-style attention.  grid = (N, H, q-blocks, k-blocks); the
# k-block axis carries the online-softmax state in scratch; every other axis
# is independent ("parallel").
# ---------------------------------------------------------------------------
def _flash_attn_kernel(q_ref, k_ref, v_ref, mask_ref, o_ref, m_s, l_s, acc_s):
    """One (batch, head, q-block, k-block) step.

    q_ref : (1, 1, bq, D) bf16   (softmax scale already folded into Wq)
    k_ref : (1, 1, bk, D) bf16
    v_ref : (1, 1, bk, D) bf16
    mask  : (1, 1, bk)    f32    (1 = visible, 0 = masked)
    o_ref : (1, 1, bq, D) bf16   per-head context, written at the last k-block
    """
    ki = pl.program_id(3)
    nk = pl.num_programs(3)

    @pl.when(ki == 0)
    def _():
        m_s[...] = jnp.full_like(m_s, -jnp.inf)
        l_s[...] = jnp.zeros_like(l_s)
        acc_s[...] = jnp.zeros_like(acc_s)

    qb = q_ref[0, 0]                          # (bq, D) bf16
    kb = k_ref[0, 0]                          # (bk, D) bf16
    vb = v_ref[0, 0]                          # (bk, D) bf16

    # energy = q @ k^T via a transposed contraction (no kb.T relayout), f32 acc.
    s = lax.dot_general(qb, kb, (((1,), (1,)), ((), ())),
                        preferred_element_type=jnp.float32)        # (bq, bk)
    # masked_fill semantics of the reference: fully masked rows -> uniform softmax.
    s = jnp.where(mask_ref[0] == 0.0, jnp.float32(-1e20), s)

    m_prev = m_s[...]
    m_new = jnp.maximum(m_prev, jnp.max(s, axis=-1, keepdims=True))
    alpha = jnp.exp(m_prev - m_new)
    p = jnp.exp(s - m_new)
    l_s[...] = alpha * l_s[...] + jnp.sum(p, axis=-1, keepdims=True)
    acc_s[...] = alpha * acc_s[...] + jnp.dot(p.astype(jnp.bfloat16), vb,
                                              preferred_element_type=jnp.float32)
    m_s[...] = m_new

    @pl.when(ki == nk - 1)
    def _():
        ctx = acc_s[...] * pl.reciprocal(l_s[...], approx=True)    # EUP, not VALU divide
        o_ref[0, 0] = ctx.astype(o_ref.dtype)


def _flash_attention(qp, kp, vp, mask, *, block_q, block_k):
    N, H, Lq, D = qp.shape
    Lk = kp.shape[2]
    assert Lq % block_q == 0 and Lk % block_k == 0
    nq = Lq // block_q
    nk = Lk // block_k

    cost = pl.CostEstimate(
        flops=4 * N * H * Lq * Lk * D,                 # QK^T + PV
        transcendentals=N * H * Lq * Lk,               # exp
        bytes_accessed=int(qp.size * 2 + (kp.size + vp.size) * 2 * nq
                           + mask.size * 4 + N * H * Lq * D * 2),
    )

    return pl.pallas_call(
        _flash_attn_kernel,
        out_shape=jax.ShapeDtypeStruct((N, H, Lq, D), jnp.bfloat16),
        grid_spec=pltpu.PrefetchScalarGridSpec(
            num_scalar_prefetch=0,
            grid=(N, H, nq, nk),
            in_specs=[
                pl.BlockSpec((1, 1, block_q, D), lambda n, h, qi, ki: (n, h, qi, 0)),
                pl.BlockSpec((1, 1, block_k, D), lambda n, h, qi, ki: (n, h, ki, 0)),
                pl.BlockSpec((1, 1, block_k, D), lambda n, h, qi, ki: (n, h, ki, 0)),
                pl.BlockSpec((1, 1, block_k),    lambda n, h, qi, ki: (n, 0, ki)),
            ],
            out_specs=pl.BlockSpec((1, 1, block_q, D),
                                   lambda n, h, qi, ki: (n, h, qi, 0)),
            scratch_shapes=[
                pltpu.VMEM((block_q, 1), jnp.float32),   # running max
                pltpu.VMEM((block_q, 1), jnp.float32),   # running sum
                pltpu.VMEM((block_q, D), jnp.float32),   # un-normalized context
            ],
        ),
        compiler_params=pltpu.CompilerParams(
            # batch / head / q-block are independent -> shard across both v7x TCs
            # even when N == 1; the k-block axis carries the online-softmax state.
            dimension_semantics=("parallel", "parallel", "parallel", "arbitrary"),
            vmem_limit_bytes=_VMEM_LIMIT,
        ),
        cost_estimate=cost,
    )(qp, kp, vp, mask)


# ---------------------------------------------------------------------------
# Forward wrapper (PyTorch-equivalent reshapes + the three Pallas stages).
# ---------------------------------------------------------------------------
def gqa_forward(values, keys, query, mask, params, *,
                embed_size: int, heads: int, group_size: int = 1,
                block_q: int = 256, block_k: int = 512,
                out_dtype=jnp.float32, compute_dtype=jnp.bfloat16):
    D = embed_size // heads
    assert D * heads == embed_size, "Embedding size needs to be divisible by heads"
    # The reference module's `queries` Linear expects head_dim-sized inputs; its
    # forward only runs (without a shape error) when group_size == 1.
    assert group_size == 1, "reference module only supports group_size == 1"

    N, Lv, _ = values.shape
    Lk = keys.shape[1]
    Lq = query.shape[1]
    assert Lv == Lk, "value_len must equal key_len (as in the reference einsum)"
    assert Lq % 16 == 0 and Lk % 16 == 0, "sequence lengths must be 16-aligned (bf16 tiles)"

    bq = _pick_block(Lq, block_q)
    bk = _pick_block(Lk, block_k)

    # --- PyTorch-equivalent reshapes (head-major) + group mean (identity for gs=1) ---
    q = query.reshape(N, Lq, heads, group_size, D // group_size).mean(axis=-2)  # (N,Lq,H,D)
    q = q.transpose(0, 2, 1, 3).astype(compute_dtype)                            # (N,H,Lq,D)
    k = keys.reshape(N, Lk, heads, D).transpose(0, 2, 1, 3).astype(compute_dtype)
    v = values.reshape(N, Lv, heads, D).transpose(0, 2, 1, 3).astype(compute_dtype)

    # --- weights pre-transposed for "x @ W.T"; softmax scale folded into Wq ---
    inv_scale = jnp.float32(1.0 / math.sqrt(embed_size))
    WqT = (params["Wq"].T.astype(jnp.float32) * inv_scale).astype(compute_dtype)  # (D, D)
    WkT = params["Wk"].T.astype(compute_dtype)                                    # (D, D)
    WvT = params["Wv"].T.astype(compute_dtype)                                    # (D, D)
    WoT = params["Wo"].T.astype(compute_dtype)                                    # (E, E)
    bo = params["b"].reshape(1, embed_size).astype(jnp.float32)                   # (1, E)
    zero_d = jnp.zeros((1, D), jnp.float32)                                       # no proj bias

    # --- shared per-head Q/K/V projections: one (rows, D) @ (D, D) matmul each ---
    qp = _rows_matmul(q.reshape(N * heads * Lq, D), WqT, zero_d,
                      out_dtype=compute_dtype).reshape(N, heads, Lq, D)
    kp = _rows_matmul(k.reshape(N * heads * Lk, D), WkT, zero_d,
                      out_dtype=compute_dtype).reshape(N, heads, Lk, D)
    vp = _rows_matmul(v.reshape(N * heads * Lk, D), WvT, zero_d,
                      out_dtype=compute_dtype).reshape(N, heads, Lk, D)

    # mask as f32 (1 = visible, 0 = masked); robust to any 0/1 mask dtype
    mask_f = (mask != 0).astype(jnp.float32).reshape(N, 1, Lk)

    # --- tiled flash attention: per-head context (N, H, Lq, D) bf16 ---
    ctx = _flash_attention(qp, kp, vp, mask_f, block_q=bq, block_k=bk)

    # --- fc_out: single full-depth (rows, E) @ (E, E) matmul + bias ---
    # head-concat relayout ('nqhd' order) handled by XLA between the two kernels
    ctx2 = ctx.transpose(0, 2, 1, 3).reshape(N * Lq, embed_size)
    out = _rows_matmul(ctx2, WoT, bo, out_dtype=out_dtype)
    return out.reshape(N, Lq, embed_size)


# ---------------------------------------------------------------------------
# Pure-JAX (f32) transcription of the PyTorch forward, for the correctness check.
# ---------------------------------------------------------------------------
def gqa_reference(values, keys, query, mask, params, *,
                  embed_size: int, heads: int, group_size: int = 1):
    D = embed_size // heads
    N, Lv, _ = values.shape
    Lk = keys.shape[1]
    Lq = query.shape[1]
    v = values.reshape(N, Lv, heads, D)
    k = keys.reshape(N, Lk, heads, D)
    q = query.reshape(N, Lq, heads, D)
    q = q.reshape(N, Lq, heads, group_size, D // group_size).mean(axis=-2)
    v = jnp.einsum("nlhd,ed->nlhe", v, params["Wv"])
    k = jnp.einsum("nlhd,ed->nlhe", k, params["Wk"])
    q = jnp.einsum("nqhd,ed->nqhe", q, params["Wq"])
    energy = jnp.einsum("nqhd,nkhd->nhqk", q, k)
    m = mask[:, None, None, :]
    energy = jnp.where(m == 0, jnp.float32(-1e20), energy)
    att = jax.nn.softmax(energy / jnp.sqrt(jnp.float32(embed_size)), axis=3)
    out = jnp.einsum("nhql,nlhd->nqhd", att, v).reshape(N, Lq, heads * D)
    return out @ params["Wo"].T + params["b"]


if __name__ == "__main__":
    # small, consistent shapes (L multiple of 16 for bf16 sublane packing)
    N, L, embed_size, heads, group_size = 2, 16, 32, 4, 1
    D = embed_size // heads

    key = jax.random.PRNGKey(0)
    kv, kk, kq, k1, k2, k3, k4, k5 = jax.random.split(key, 8)

    values = jax.random.normal(kv, (N, L, embed_size), jnp.float32)
    keys_in = jax.random.normal(kk, (N, L, embed_size), jnp.float32)
    query = jax.random.normal(kq, (N, L, embed_size), jnp.float32)
    # mask: (N, key_len) of 0/1; zero out the last two key positions of batch 0
    mask = jnp.ones((N, L), jnp.float32).at[0, -2:].set(0.0)

    scale = 1.0 / math.sqrt(D)
    fc_scale = 1.0 / math.sqrt(heads * D)
    params = {
        "Wq": jax.random.uniform(k1, (D, D), jnp.float32, -scale, scale),
        "Wk": jax.random.uniform(k2, (D, D), jnp.float32, -scale, scale),
        "Wv": jax.random.uniform(k3, (D, D), jnp.float32, -scale, scale),
        "Wo": jax.random.uniform(k4, (embed_size, heads * D), jnp.float32,
                                 -fc_scale, fc_scale),
        "b": jax.random.uniform(k5, (embed_size,), jnp.float32, -fc_scale, fc_scale),
    }

    out = gqa_forward(values, keys_in, query, mask, params,
                      embed_size=embed_size, heads=heads, group_size=group_size)
    out = jax.block_until_ready(out)

    ref = gqa_reference(values, keys_in, query, mask, params,
                        embed_size=embed_size, heads=heads, group_size=group_size)
    assert out.shape == (N, L, embed_size)
    # bf16 MXU inputs + approximate-reciprocal softmax normalization -> loose tol
    max_err = float(jnp.max(jnp.abs(out - ref)))
    assert jnp.allclose(out, ref, rtol=2e-2, atol=2e-2), max_err

    print("KERNEL_OK")
</pallas_src>

<mosaic_0001>
module attributes {stable_mosaic.version = 11 : i64} {
  func.func @_rows_matmul_kernel(%arg0: i32, %arg1: memref<128x8xbf16, #tpu.memory_space<vmem>>, %arg2: memref<8x8xbf16, #tpu.memory_space<vmem>>, %arg3: memref<1x8xf32, #tpu.memory_space<vmem>>, %arg4: memref<128x8xbf16, #tpu.memory_space<vmem>>) attributes {dimension_semantics = [#tpu.dimension_semantics<parallel>], iteration_bounds = array<i64: 1>, scalar_prefetch = 0 : i64, scratch_operands = 0 : i64, tpu.core_type = #tpu.core_type<tc>, window_params = [{transform_indices = @transform_0, window_bounds = array<i64: 128, 8>}, {pipeline_mode = #tpu.pipeline_mode<synchronous>, transform_indices = @transform_1, window_bounds = array<i64: 8, 8>}, {pipeline_mode = #tpu.pipeline_mode<synchronous>, transform_indices = @transform_2, window_bounds = array<i64: 1, 8>}, {transform_indices = @transform_3, window_bounds = array<i64: 128, 8>}]} {
    %c0 = arith.constant 0 : index
    %c0_0 = arith.constant 0 : index
    %0 = vector.load %arg1[%c0, %c0_0] : memref<128x8xbf16, #tpu.memory_space<vmem>>, vector<128x8xbf16>
    %c0_1 = arith.constant 0 : index
    %c0_2 = arith.constant 0 : index
    %1 = vector.load %arg2[%c0_1, %c0_2] : memref<8x8xbf16, #tpu.memory_space<vmem>>, vector<8x8xbf16>
    %cst = arith.constant dense<0.000000e+00> : vector<128x8xf32>
    %2 = tpu.matmul %0, %1, %cst {dimension_numbers = #tpu.dot_dimension_numbers<[1], [0], [0], [1], [0, 0, 1, 1], [], []>} : vector<128x8xbf16>, vector<8x8xbf16>, vector<128x8xf32> -> vector<128x8xf32>
    %c0_3 = arith.constant 0 : index
    %c0_4 = arith.constant 0 : index
    %3 = vector.load %arg3[%c0_3, %c0_4] : memref<1x8xf32, #tpu.memory_space<vmem>>, vector<1x8xf32>
    %4 = vector.broadcast %3 : vector<1x8xf32> to vector<128x8xf32>
    %5 = arith.addf %2, %4 : vector<128x8xf32>
    %6 = arith.truncf %5 : vector<128x8xf32> to vector<128x8xbf16>
    %c0_5 = arith.constant 0 : index
    %c0_6 = arith.constant 0 : index
    %7 = vector.load %arg4[%c0_5, %c0_6] : memref<128x8xbf16, #tpu.memory_space<vmem>>, vector<128x8xbf16>
    tpu.vector_store %arg4[%c0_5, %c0_6], %6 {strides = array<i32>} : memref<128x8xbf16, #tpu.memory_space<vmem>>, vector<128x8xbf16>,
    return
  }
  func.func @transform_0(%arg0: i32) -> (i32, i32) {
    %c0_i32 = arith.constant 0 : i32
    %c0_i32_0 = arith.constant 0 : i32
    return %arg0, %c0_i32 : i32, i32
  }
  func.func @transform_1(%arg0: i32) -> (i32, i32) {
    %c0_i32 = arith.constant 0 : i32
    %c0_i32_0 = arith.constant 0 : i32
    %c0_i32_1 = arith.constant 0 : i32
    return %c0_i32, %c0_i32_0 : i32, i32
  }
  func.func @transform_2(%arg0: i32) -> (i32, i32) {
    %c0_i32 = arith.constant 0 : i32
    %c0_i32_0 = arith.constant 0 : i32
    %c0_i32_1 = arith.constant 0 : i32
    return %c0_i32, %c0_i32_0 : i32, i32
  }
  func.func @transform_3(%arg0: i32) -> (i32, i32) {
    %c0_i32 = arith.constant 0 : i32
    %c0_i32_0 = arith.constant 0 : i32
    return %arg0, %c0_i32 : i32, i32
  }
}

</mosaic_0001>

<llo_original>
// kernel: tpu_custom_call.1
$region0: #{tpu_custom_call.1}
  #allocation0 [shape = 'u32[]', space=smem, size = 0x4, offset = 0x4, fixed_abs, tag = 'smem constant byte address 0x4 - core index']
  #allocation1 [shape = 'u32[144,128]{1,0:T(1,128)}', space=vmem, size = 0x12000, scoped, tag = 'internal scratch']
  %s0 = inlined_call_operand.vmem [shape: bf16[128,8], index: 0, kind: input, shape index: {}]
  %s1 = inlined_call_operand.vmem [shape: bf16[8,8], index: 1, kind: input, shape index: {}]
  %s2 = inlined_call_operand.vmem [shape: f32[1,8], index: 2, kind: input, shape index: {}]
  %s3 = inlined_call_operand.vmem [shape: bf16[128,8], index: 3, kind: output, shape index: {}]
  %s4 = sld [smem:[#allocation0]]
  $region22: #{tpu_custom_call.1} parent=0
    _
  %s6 = ssub.s32 1, %s4
  %s7 = scalar_select 0, %s6, %s4
  // Predicated region
  $region2: #{tpu_custom_call.1} parent=0 // pred_check
    _
  $region3: #{tpu_custom_call.1} parent=0 // pred_check_branch
    %9 = sbr.rel (0) target = $region5
  $region4: #{tpu_custom_call.1} parent=0 // pred_region
    _
  $region5: #{tpu_custom_call.1} parent=0 // pred_fallthru
    _
  // Predicated region
  $region6: #{tpu_custom_call.1} parent=0 // pred_check
    _
  $region7: #{tpu_custom_call.1} parent=0 // pred_check_branch
    %11 = sbr.rel (0) target = $region9
  $region8: #{tpu_custom_call.1} parent=0 // pred_region
    _
  $region9: #{tpu_custom_call.1} parent=0 // pred_fallthru
    _
  // Predicated region
  $region10: #{tpu_custom_call.1} parent=0 // pred_check
    _
  $region11: #{tpu_custom_call.1} parent=0 // pred_check_branch
    %13 = sbr.rel (0) target = $region13
  $region12: #{tpu_custom_call.1} parent=0 // pred_region
    _
  $region13: #{tpu_custom_call.1} parent=0 // pred_fallthru
    _
  %v15 = vld [vmem:[%s0] sm:$0xf]
  %v16 = vld [vmem:[%s0 + $0x4] sm:$0xf]
  %v17 = vld [vmem:[%s0 + $0x8] sm:$0xf]
  %v18 = vld [vmem:[%s0 + $0xc] sm:$0xf]
  %v19 = vld [vmem:[%s0 + $0x10] sm:$0xf]
  %v20 = vld [vmem:[%s0 + $0x14] sm:$0xf]
  %v21 = vld [vmem:[%s0 + $0x18] sm:$0xf]
  %v22 = vld [vmem:[%s0 + $0x1c] sm:$0xf]
  %v23 = vld [vmem:[%s0 + $0x20] sm:$0xf]
  %v24 = vld [vmem:[%s0 + $0x24] sm:$0xf]
  %v25 = vld [vmem:[%s0 + $0x28] sm:$0xf]
  %v26 = vld [vmem:[%s0 + $0x2c] sm:$0xf]
  %v27 = vld [vmem:[%s0 + $0x30] sm:$0xf]
  %v28 = vld [vmem:[%s0 + $0x34] sm:$0xf]
  %v29 = vld [vmem:[%s0 + $0x38] sm:$0xf]
  %v30 = vld [vmem:[%s0 + $0x3c] sm:$0xf]
  %v31 = vld [vmem:[%s1] sm:$0xf]
  %v32 = vld [vmem:[%s2] sm:$0x1]
  %v34 = vlaneseq
  %v35 = vshrl.u32 %v34, 7
  %v36 = vsub.s32 0, %v35
  %v37 = vrot.slane %v32, %v36
  %v55 = vunpack.c.l.b16 %v15
  %v56 = vunpack.c.l.b16 %v16
  %v57 = vunpack.c.l.b16 %v17
  %v58 = vunpack.c.l.b16 %v18
  %v59 = vunpack.c.l.b16 %v19
  %v60 = vunpack.c.l.b16 %v20
  %v61 = vunpack.c.l.b16 %v21
  %v62 = vunpack.c.l.b16 %v22
  %v63 = vunpack.c.l.b16 %v23
  %v64 = vunpack.c.l.b16 %v24
  %v65 = vunpack.c.l.b16 %v25
  %v66 = vunpack.c.l.b16 %v26
  %v67 = vunpack.c.l.b16 %v27
  %v68 = vunpack.c.l.b16 %v28
  %v69 = vunpack.c.l.b16 %v29
  %v70 = vunpack.c.l.b16 %v30
  %v71 = vpack.c.b16 %v56, %v55
  %v72 = vpack.c.b16 %v58, %v57
  %v73 = vpack.c.b16 %v60, %v59
  %v74 = vpack.c.b16 %v62, %v61
  %v75 = vpack.c.b16 %v64, %v63
  %v76 = vpack.c.b16 %v66, %v65
  %v77 = vpack.c.b16 %v68, %v67
  %v78 = vpack.c.b16 %v70, %v69
  %vm79 = vcmask 64512
  %v81 = vsel %vm79, %v71, 0
  %v84 = vsel %vm79, %v72, 0
  %v87 = vsel %vm79, %v73, 0
  %v90 = vsel %vm79, %v74, 0
  %v93 = vsel %vm79, %v75, 0
  %v96 = vsel %vm79, %v76, 0
  %v99 = vsel %vm79, %v77, 0
  %v102 = vsel %vm79, %v78, 0
  %vm104 = vcmask 1043456
  %v106 = vsel %vm104, %v31, 0
  %108 = vmatprep.subr.bf16.mxu0 0
  %109 = vmatpush1.bf16.msra.mxu0 0
  %110 = vmatprep.subr.bf16.mxu0 0
  %111 = vmatpush1.bf16.msra.mxu0 0
  %112 = vmatprep.subr.bf16.mxu0 0
  %113 = vmatpush1.bf16.msra.mxu0 0
  %114 = vmatprep.subr.bf16.mxu0 0
  %115 = vmatpush1.bf16.msra.mxu0 0
  %116 = vmatprep.subr.bf16.mxu0 0
  %117 = vmatpush1.bf16.msra.mxu0 0
  %118 = vmatprep.subr.bf16.mxu0 0
  %119 = vmatpush1.bf16.msra.mxu0 0
  %120 = vmatprep.subr.bf16.mxu0 0
  %121 = vmatpush1.bf16.msra.mxu0 0
  %122 = vmatprep.subr.bf16.mxu0 0
  %123 = vmatpush1.bf16.msra.mxu0 %v106
  %124 = vmatprep.subr.bf16.mxu0 0
  %125 = vmatpush2.bf16.msra.mxu0 0
  %126 = vmatprep.subr.bf16.mxu0 0
  %127 = vmatpush2.bf16.msra.mxu0 0
  %128 = vmatprep.subr.bf16.mxu0 0
  %129 = vmatpush2.bf16.msra.mxu0 0
  %130 = vmatprep.subr.bf16.mxu0 0
  %131 = vmatpush2.bf16.msra.mxu0 0
  %132 = vmatprep.subr.bf16.mxu0 0
  %133 = vmatpush2.bf16.msra.mxu0 0
  %134 = vmatprep.subr.bf16.mxu0 0
  %135 = vmatpush2.bf16.msra.mxu0 0
  %136 = vmatprep.subr.bf16.mxu0 0
  %137 = vmatpush2.bf16.msra.mxu0 0
  %138 = vmatprep.subr.bf16.mxu0 0
  %139 = vmatpush2.bf16.msra.mxu0 0
  %140 = vmatprep.mubr.bf16.mxu0 0
  %141 = vmatmul.mubr.bf16.gmra.mxu0 %v81
  %v142 = vpop.f32.mrf.mxu0
  %v143 = vadd.f32 %v37, %v142
  %v144 = vpop.f32.mrf.mxu0
  %v145 = vpop.f32.mrf.mxu0
  %v146 = vadd.f32 %v37, %v145
  %v147 = vpop.f32.mrf.mxu0
  %148 = vmatprep.mubr.bf16.mxu0 0
  %149 = vmatmul.mubr.bf16.gmra.mxu0 %v84
  %v150 = vpop.f32.mrf.mxu0
  %v151 = vadd.f32 %v37, %v150
  %v152 = vpop.f32.mrf.mxu0
  %v153 = vpop.f32.mrf.mxu0
  %v154 = vadd.f32 %v37, %v153
  %v155 = vpop.f32.mrf.mxu0
  %156 = vmatprep.mubr.bf16.mxu0 0
  %157 = vmatmul.mubr.bf16.gmra.mxu0 %v87
  %v158 = vpop.f32.mrf.mxu0
  %v159 = vadd.f32 %v37, %v158
  %v160 = vpop.f32.mrf.mxu0
  %v161 = vpop.f32.mrf.mxu0
  %v162 = vadd.f32 %v37, %v161
  %v163 = vpop.f32.mrf.mxu0
  %164 = vmatprep.mubr.bf16.mxu0 0
  %165 = vmatmul.mubr.bf16.gmra.mxu0 %v90
  %v166 = vpop.f32.mrf.mxu0
  %v167 = vadd.f32 %v37, %v166
  %v168 = vpop.f32.mrf.mxu0
  %v169 = vpop.f32.mrf.mxu0
  %v170 = vadd.f32 %v37, %v169
  %v171 = vpop.f32.mrf.mxu0
  %172 = vmatprep.mubr.bf16.mxu0 0
  %173 = vmatmul.mubr.bf16.gmra.mxu0 %v93
  %v174 = vpop.f32.mrf.mxu0
  %v175 = vadd.f32 %v37, %v174
  %v176 = vpop.f32.mrf.mxu0
  %v177 = vpop.f32.mrf.mxu0
  %v178 = vadd.f32 %v37, %v177
  %v179 = vpop.f32.mrf.mxu0
  %180 = vmatprep.mubr.bf16.mxu0 0
  %181 = vmatmul.mubr.bf16.gmra.mxu0 %v96
  %v182 = vpop.f32.mrf.mxu0
  %v183 = vadd.f32 %v37, %v182
  %v184 = vpop.f32.mrf.mxu0
  %v185 = vpop.f32.mrf.mxu0
  %v186 = vadd.f32 %v37, %v185
  %v187 = vpop.f32.mrf.mxu0
  %188 = vmatprep.mubr.bf16.mxu0 0
  %189 = vmatmul.mubr.bf16.gmra.mxu0 %v99
  %v190 = vpop.f32.mrf.mxu0
  %v191 = vadd.f32 %v37, %v190
  %v192 = vpop.f32.mrf.mxu0
  %v193 = vpop.f32.mrf.mxu0
  %v194 = vadd.f32 %v37, %v193
  %v195 = vpop.f32.mrf.mxu0
  %196 = vmatprep.mubr.bf16.mxu0 0
  %197 = vmatmul.mubr.bf16.gmra.mxu0 %v102
  %v198 = vpop.f32.mrf.mxu0
  %v199 = vadd.f32 %v37, %v198
  %v200 = vpop.f32.mrf.mxu0
  %v201 = vpop.f32.mrf.mxu0
  %v202 = vadd.f32 %v37, %v201
  %v203 = vpop.f32.mrf.mxu0
  %204 = vdwg.mxu0
  %v205 = vpack.c.bf16 %v146, %v143
  %v206 = vpack.c.bf16 %v154, %v151
  %v207 = vpack.c.bf16 %v162, %v159
  %v208 = vpack.c.bf16 %v170, %v167
  %v209 = vpack.c.bf16 %v178, %v175
  %v210 = vpack.c.bf16 %v186, %v183
  %v211 = vpack.c.bf16 %v194, %v191
  %v212 = vpack.c.bf16 %v202, %v199
  %v221 = vunpack.c.l.b16 %v205
  %v222 = vunpack.c.h.b16 %v205
  %v223 = vunpack.c.l.b16 %v206
  %v224 = vunpack.c.h.b16 %v206
  %v225 = vunpack.c.l.b16 %v207
  %v226 = vunpack.c.h.b16 %v207
  %v227 = vunpack.c.l.b16 %v208
  %v228 = vunpack.c.h.b16 %v208
  %v229 = vunpack.c.l.b16 %v209
  %v230 = vunpack.c.h.b16 %v209
  %v231 = vunpack.c.l.b16 %v210
  %v232 = vunpack.c.h.b16 %v210
  %v233 = vunpack.c.l.b16 %v211
  %v234 = vunpack.c.h.b16 %v211
  %v235 = vunpack.c.l.b16 %v212
  %v236 = vunpack.c.h.b16 %v212
  %v237 = vpack.c.b16 %v221, %v221
  %v238 = vpack.c.b16 %v222, %v222
  %v239 = vpack.c.b16 %v223, %v223
  %v240 = vpack.c.b16 %v224, %v224
  %v241 = vpack.c.b16 %v225, %v225
  %v242 = vpack.c.b16 %v226, %v226
  %v243 = vpack.c.b16 %v227, %v227
  %v244 = vpack.c.b16 %v228, %v228
  %v245 = vpack.c.b16 %v229, %v229
  %v246 = vpack.c.b16 %v230, %v230
  %v247 = vpack.c.b16 %v231, %v231
  %v248 = vpack.c.b16 %v232, %v232
  %v249 = vpack.c.b16 %v233, %v233
  %v250 = vpack.c.b16 %v234, %v234
  %v251 = vpack.c.b16 %v235, %v235
  %v252 = vpack.c.b16 %v236, %v236
  %vm269 = vcmask 60416
  %270 = vst.msk [vmem:[%s3] sm:$0xf] %vm269, %v237
  %271 = vst.msk [vmem:[%s3 + $0x4] sm:$0xf] %vm269, %v238
  %272 = vst.msk [vmem:[%s3 + $0x8] sm:$0xf] %vm269, %v239
  %273 = vst.msk [vmem:[%s3 + $0xc] sm:$0xf] %vm269, %v240
  %274 = vst.msk [vmem:[%s3 + $0x10] sm:$0xf] %vm269, %v241
  %275 = vst.msk [vmem:[%s3 + $0x14] sm:$0xf] %vm269, %v242
  %276 = vst.msk [vmem:[%s3 + $0x18] sm:$0xf] %vm269, %v243
  %277 = vst.msk [vmem:[%s3 + $0x1c] sm:$0xf] %vm269, %v244
  %278 = vst.msk [vmem:[%s3 + $0x20] sm:$0xf] %vm269, %v245
  %279 = vst.msk [vmem:[%s3 + $0x24] sm:$0xf] %vm269, %v246
  %280 = vst.msk [vmem:[%s3 + $0x28] sm:$0xf] %vm269, %v247
  %281 = vst.msk [vmem:[%s3 + $0x2c] sm:$0xf] %vm269, %v248
  %282 = vst.msk [vmem:[%s3 + $0x30] sm:$0xf] %vm269, %v249
  %283 = vst.msk [vmem:[%s3 + $0x34] sm:$0xf] %vm269, %v250
  %284 = vst.msk [vmem:[%s3 + $0x38] sm:$0xf] %vm269, %v251
  %285 = vst.msk [vmem:[%s3 + $0x3c] sm:$0xf] %vm269, %v252
  // Predicated region
  $region14: #{tpu_custom_call.1} parent=0 // pred_check
    _
  $region15: #{tpu_custom_call.1} parent=0 // pred_check_branch
    %287 = sbr.rel (0) target = $region17
  $region16: #{tpu_custom_call.1} parent=0 // pred_region
    _
  $region17: #{tpu_custom_call.1} parent=0 // pred_fallthru
    _
  // Predicated region
  $region18: #{tpu_custom_call.1} parent=0 // pred_check
    _
  $region19: #{tpu_custom_call.1} parent=0 // pred_check_branch
    %289 = sbr.rel (0) target = $region21
  $region20: #{tpu_custom_call.1} parent=0 // pred_region
    _
  $region21: #{tpu_custom_call.1} parent=0 // pred_fallthru
    _

</llo_original>
